<compile_context>
chip_gen: v6e
topology: v6e:2x2x1
jax: 0.10.0
libtpu: 0.0.40
codegen_flags: <defaults>
</compile_context>

<pallas_src>
import functools

import jax
import jax.numpy as jnp
import numpy as np
from jax.experimental import pallas as pl
from jax.experimental.pallas import tpu as pltpu


def _round_up(x, m):
    return ((x + m - 1) // m) * m


def _encoder_kernel(num_layers, precision, *refs):
    """Fused MLP encoder + heads.

    refs (num_layers > 1):
      x, y, w0, b0, w_rest, b_rest, w_top, w_bot, head_b, out
    refs (num_layers == 1):
      x, y, w0, b0,                 w_top, w_bot, head_b, out
    """
    if num_layers > 1:
        (x_ref, y_ref, w0_ref, b0_ref, w_rest_ref, b_rest_ref,
         w_top_ref, w_bot_ref, hb_ref, out_ref) = refs
    else:
        (x_ref, y_ref, w0_ref, b0_ref,
         w_top_ref, w_bot_ref, hb_ref, out_ref) = refs

    cdt = w0_ref.dtype

    # FC layer 0.  Bias add + ReLU stay in f32 (v5e has no bf16 VPU).
    h = jnp.dot(x_ref[...].astype(cdt), w0_ref[...],
                preferred_element_type=jnp.float32, precision=precision)
    h = jnp.maximum(h + b0_ref[...], 0.0)

    # Remaining FC layers (statically unrolled).
    for i in range(num_layers - 1):
        h = jnp.dot(h.astype(cdt), w_rest_ref[i],
                    preferred_element_type=jnp.float32, precision=precision)
        h = jnp.maximum(h + b_rest_ref[i], 0.0)

    # Fused heads: one lane-dense block [mu | logvar | pad-to-128].
    heads = jnp.dot(h.astype(cdt), w_top_ref[...],
                    preferred_element_type=jnp.float32, precision=precision)
    heads = heads + jnp.dot(y_ref[...].astype(cdt), w_bot_ref[...],
                            preferred_element_type=jnp.float32,
                            precision=precision)
    out_ref[...] = (heads + hb_ref[...]).astype(out_ref.dtype)


def pack_params(params, *, latent_dim, cond_embed_dim,
                compute_dtype=jnp.float32):
    """One-time parameter packing (NOT on the per-call path).

    params: {"fc": [(w, b), ...], "w_mlg", "b_mlg", "w_me", "b_me",
             "w_le", "b_le"}; weights are (in, out), biases (1, out).
    """
    fc = params["fc"]
    num_layers = len(fc)
    w0, b0 = fc[0]
    hidden = w0.shape[1]
    cond_dim = params["w_me"].shape[0]
    ld, ce = latent_dim, cond_embed_dim
    od = ld + ce
    width = _round_up(2 * od, 128)          # single lane-dense head block

    packed = {
        "w0": w0.astype(compute_dtype),
        "b0": b0.reshape(1, hidden).astype(jnp.float32),
    }
    if num_layers > 1:
        packed["w_rest"] = jnp.stack(
            [w for w, _ in fc[1:]], axis=0).astype(compute_dtype)
        packed["b_rest"] = jnp.stack(
            [b.reshape(1, hidden) for _, b in fc[1:]], axis=0
        ).astype(jnp.float32)               # added post-matmul in f32

    # De-interleave mu_logvar_gen: mu = even output cols, logvar = odd cols.
    w_mlg, b_mlg = params["w_mlg"], params["b_mlg"]
    wmu, bmu = w_mlg[:, 0::2], b_mlg[:, 0::2]
    wlv, blv = w_mlg[:, 1::2], b_mlg[:, 1::2]

    # Block-structured head weights sharing one 128-padded lane layout:
    # lanes [0:ld] = mu_core, [ld:od] = mu_emb, [od:od+ld] = logvar_core,
    # [od+ld:2*od] = logvar_emb, rest = zero pad.
    w_top = jnp.zeros((hidden, width), jnp.float32)
    w_top = w_top.at[:, :ld].set(wmu).at[:, od:od + ld].set(wlv)

    w_bot = jnp.zeros((cond_dim, width), jnp.float32)
    w_bot = w_bot.at[:, ld:od].set(params["w_me"])
    w_bot = w_bot.at[:, od + ld:2 * od].set(params["w_le"])

    head_b = jnp.zeros((1, width), jnp.float32)
    head_b = head_b.at[:, :ld].set(bmu.reshape(-1))
    head_b = head_b.at[:, ld:od].set(params["b_me"].reshape(-1))
    head_b = head_b.at[:, od:od + ld].set(blv.reshape(-1))
    head_b = head_b.at[:, od + ld:2 * od].set(params["b_le"].reshape(-1))

    packed["w_top"] = w_top.astype(compute_dtype)
    packed["w_bot"] = w_bot.astype(compute_dtype)
    packed["head_b"] = head_b                # f32, added post-matmul
    return packed


def _pick_tiling(B, row_bytes):
    """Choose (tile_b, padded_B).

    Tiles are sized so double-buffered x/y/out tiles stay within ~12 MiB of
    VMEM (<< 32 MiB scoped default), capped at 4096 rows.  For B > 16 we use
    >= 2 grid steps so the "parallel" batch axis shards across v7x's two
    TensorCores; the tile is fitted to B so pad waste is minimal.  B <= 16
    runs as a single full-extent block with no padding at all.
    """
    target = int((12 << 20) // max(1, 2 * row_bytes))
    target = max(256, min(4096, target))
    target = max(8, (target // 8) * 8)
    if B <= 16:
        return B, B
    n_steps = max(2, -(-B // target))
    tile = _round_up(-(-B // n_steps), 8)
    return tile, _round_up(B, tile)


@functools.partial(
    jax.jit,
    static_argnames=("num_layers", "latent_dim", "cond_embed_dim",
                     "precision"))
def cond_embed_encoder_fc(x, y, packed, *, num_layers, latent_dim,
                          cond_embed_dim, precision=None):
    input_dim, hidden = packed["w0"].shape
    cond_dim = packed["w_bot"].shape[0]
    width = packed["w_top"].shape[1]
    out_dim = latent_dim + cond_embed_dim

    B = x.shape[0]
    row_bytes = (x.dtype.itemsize * input_dim + y.dtype.itemsize * cond_dim
                 + 4 * width + 4 * hidden)
    tile_b, b_pad = _pick_tiling(B, row_bytes)
    if b_pad != B:   # only when unavoidable; waste bounded by one tile
        x = jnp.pad(x, ((0, b_pad - B), (0, 0)))
        y = jnp.pad(y, ((0, b_pad - B), (0, 0)))

    inputs = [x, y, packed["w0"], packed["b0"]]
    in_specs = [
        pl.BlockSpec((tile_b, input_dim), lambda i: (i, 0)),
        pl.BlockSpec((tile_b, cond_dim), lambda i: (i, 0)),
        pl.BlockSpec((input_dim, hidden), lambda i: (0, 0)),   # resident
        pl.BlockSpec((1, hidden), lambda i: (0, 0)),           # resident
    ]
    if num_layers > 1:
        inputs += [packed["w_rest"], packed["b_rest"]]
        in_specs += [
            pl.BlockSpec((num_layers - 1, hidden, hidden),
                         lambda i: (0, 0, 0)),                 # resident
            pl.BlockSpec((num_layers - 1, 1, hidden),
                         lambda i: (0, 0, 0)),                 # resident
        ]
    inputs += [packed["w_top"], packed["w_bot"], packed["head_b"]]
    in_specs += [
        pl.BlockSpec((hidden, width), lambda i: (0, 0)),       # resident
        pl.BlockSpec((cond_dim, width), lambda i: (0, 0)),     # resident
        pl.BlockSpec((1, width), lambda i: (0, 0)),            # resident
    ]

    out = pl.pallas_call(
        functools.partial(_encoder_kernel, num_layers, precision),
        out_shape=jax.ShapeDtypeStruct((b_pad, width), jnp.float32),
        grid=(b_pad // tile_b,),
        in_specs=in_specs,
        out_specs=pl.BlockSpec((tile_b, width), lambda i: (i, 0)),
        compiler_params=pltpu.CompilerParams(
            dimension_semantics=("parallel",)),
    )(*inputs)

    # Cheap row + lane slice of the single packed 128-lane result.  Padded
    # batch rows carry bias-propagated values; slicing [:B] keeps them from
    # ever leaking out.
    mu = out[:B, :out_dim]
    logvar = out[:B, out_dim:2 * out_dim]
    return mu, logvar


def _init_linear(key, in_dim, out_dim):
    # Matches torch.nn.Linear default init: U(-1/sqrt(in), 1/sqrt(in)).
    k_w, k_b = jax.random.split(key)
    bound = 1.0 / float(np.sqrt(in_dim))
    w = jax.random.uniform(k_w, (in_dim, out_dim), jnp.float32, -bound, bound)
    b = jax.random.uniform(k_b, (1, out_dim), jnp.float32, -bound, bound)
    return w, b


def _reference(x, y, params, *, latent_dim, cond_embed_dim):
    # Pure-JAX reference mirroring the PyTorch forward exactly (f32).
    h = x
    for w, b in params["fc"]:
        h = jax.nn.relu(h @ w + b)
    mu_logvar = h @ params["w_mlg"] + params["b_mlg"]      # (B, 2L)
    mlv = mu_logvar.reshape(-1, latent_dim, 2)
    mu, logvar = mlv[..., 0], mlv[..., 1]
    mu_emb = y @ params["w_me"] + params["b_me"]
    logvar_emb = y @ params["w_le"] + params["b_le"]
    mu = jnp.concatenate([mu, mu_emb], axis=-1)
    logvar = jnp.concatenate([logvar, logvar_emb], axis=-1)
    return mu, logvar


if __name__ == "__main__":
    # Small shapes consistent with the module.
    B = 10
    input_dim = 64
    cond_dim = 8
    cond_embed_dim = 2
    latent_dim = 10
    hidden_dim = 32
    num_layers = 2

    root = jax.random.PRNGKey(0)
    keys = jax.random.split(root, 10 + num_layers)

    x = jax.random.normal(keys[0], (B, input_dim), jnp.float32)
    y = jax.random.normal(keys[1], (B, cond_dim), jnp.float32)

    fc = []
    for i in range(num_layers):
        in_d = input_dim if i == 0 else hidden_dim
        fc.append(_init_linear(keys[2 + i], in_d, hidden_dim))

    w_mlg, b_mlg = _init_linear(keys[2 + num_layers], hidden_dim,
                                latent_dim * 2)
    w_me, b_me = _init_linear(keys[3 + num_layers], cond_dim, cond_embed_dim)
    w_le, b_le = _init_linear(keys[4 + num_layers], cond_dim, cond_embed_dim)

    params = {
        "fc": fc,
        "w_mlg": w_mlg, "b_mlg": b_mlg,
        "w_me": w_me, "b_me": b_me,
        "w_le": w_le, "b_le": b_le,
    }

    out_dim = latent_dim + cond_embed_dim

    # --- f32 path (semantics of the PyTorch module), B <= 16 single block ---
    packed = pack_params(params, latent_dim=latent_dim,
                         cond_embed_dim=cond_embed_dim)
    mu, logvar = cond_embed_encoder_fc(
        x, y, packed, num_layers=num_layers, latent_dim=latent_dim,
        cond_embed_dim=cond_embed_dim)
    jax.block_until_ready((mu, logvar))

    mu_ref, logvar_ref = _reference(
        x, y, params, latent_dim=latent_dim, cond_embed_dim=cond_embed_dim)

    assert mu.shape == (B, out_dim)
    assert logvar.shape == (B, out_dim)
    np.testing.assert_allclose(np.asarray(mu), np.asarray(mu_ref),
                               rtol=1e-5, atol=1e-5)
    np.testing.assert_allclose(np.asarray(logvar), np.asarray(logvar_ref),
                               rtol=1e-5, atol=1e-5)

    # --- multi-step grid + padding path (B > 16 -> >=2 tiles, v7x 2 TCs) ----
    B2 = 40
    x2 = jax.random.normal(keys[5 + num_layers], (B2, input_dim), jnp.float32)
    y2 = jax.random.normal(keys[6 + num_layers], (B2, cond_dim), jnp.float32)
    mu2, logvar2 = cond_embed_encoder_fc(
        x2, y2, packed, num_layers=num_layers, latent_dim=latent_dim,
        cond_embed_dim=cond_embed_dim)
    jax.block_until_ready((mu2, logvar2))
    mu2_ref, logvar2_ref = _reference(
        x2, y2, params, latent_dim=latent_dim, cond_embed_dim=cond_embed_dim)
    np.testing.assert_allclose(np.asarray(mu2), np.asarray(mu2_ref),
                               rtol=1e-5, atol=1e-5)
    np.testing.assert_allclose(np.asarray(logvar2), np.asarray(logvar2_ref),
                               rtol=1e-5, atol=1e-5)

    # --- num_layers == 1 structural path -------------------------------------
    params1 = dict(params, fc=[fc[0]])
    packed1 = pack_params(params1, latent_dim=latent_dim,
                          cond_embed_dim=cond_embed_dim)
    mu1, logvar1 = cond_embed_encoder_fc(
        x, y, packed1, num_layers=1, latent_dim=latent_dim,
        cond_embed_dim=cond_embed_dim)
    jax.block_until_ready((mu1, logvar1))
    mu1_ref, logvar1_ref = _reference(
        x, y, params1, latent_dim=latent_dim, cond_embed_dim=cond_embed_dim)
    np.testing.assert_allclose(np.asarray(mu1), np.asarray(mu1_ref),
                               rtol=1e-5, atol=1e-5)
    np.testing.assert_allclose(np.asarray(logvar1), np.asarray(logvar1_ref),
                               rtol=1e-5, atol=1e-5)

    # --- optional bf16 activation/weight stream (f32 MXU accumulation) ------
    # Not bit-matched to the PyTorch module; use only where tolerance allows.
    packed_bf16 = pack_params(params, latent_dim=latent_dim,
                              cond_embed_dim=cond_embed_dim,
                              compute_dtype=jnp.bfloat16)
    mu_b, logvar_b = cond_embed_encoder_fc(
        x.astype(jnp.bfloat16), y.astype(jnp.bfloat16), packed_bf16,
        num_layers=num_layers, latent_dim=latent_dim,
        cond_embed_dim=cond_embed_dim)
    jax.block_until_ready((mu_b, logvar_b))
    np.testing.assert_allclose(np.asarray(mu_b), np.asarray(mu_ref),
                               rtol=1e-1, atol=1e-1)
    np.testing.assert_allclose(np.asarray(logvar_b), np.asarray(logvar_ref),
                               rtol=1e-1, atol=1e-1)

    print("KERNEL_OK")
</pallas_src>

<mosaic_0001>
module attributes {stable_mosaic.version = 11 : i64} {
  func.func @_encoder_kernel(%arg0: i32, %arg1: memref<10x64xf32, #tpu.memory_space<vmem>>, %arg2: memref<10x8xf32, #tpu.memory_space<vmem>>, %arg3: memref<64x32xf32, #tpu.memory_space<vmem>>, %arg4: memref<1x32xf32, #tpu.memory_space<vmem>>, %arg5: memref<1x32x32xf32, #tpu.memory_space<vmem>>, %arg6: memref<1x1x32xf32, #tpu.memory_space<vmem>>, %arg7: memref<32x128xf32, #tpu.memory_space<vmem>>, %arg8: memref<8x128xf32, #tpu.memory_space<vmem>>, %arg9: memref<1x128xf32, #tpu.memory_space<vmem>>, %arg10: memref<10x128xf32, #tpu.memory_space<vmem>>) attributes {dimension_semantics = [#tpu.dimension_semantics<parallel>], iteration_bounds = array<i64: 1>, scalar_prefetch = 0 : i64, scratch_operands = 0 : i64, tpu.core_type = #tpu.core_type<tc>, window_params = [{transform_indices = @transform_0, window_bounds = array<i64: 10, 64>}, {transform_indices = @transform_1, window_bounds = array<i64: 10, 8>}, {pipeline_mode = #tpu.pipeline_mode<synchronous>, transform_indices = @transform_2, window_bounds = array<i64: 64, 32>}, {pipeline_mode = #tpu.pipeline_mode<synchronous>, transform_indices = @transform_3, window_bounds = array<i64: 1, 32>}, {pipeline_mode = #tpu.pipeline_mode<synchronous>, transform_indices = @transform_4, window_bounds = array<i64: 1, 32, 32>}, {pipeline_mode = #tpu.pipeline_mode<synchronous>, transform_indices = @transform_5, window_bounds = array<i64: 1, 1, 32>}, {pipeline_mode = #tpu.pipeline_mode<synchronous>, transform_indices = @transform_6, window_bounds = array<i64: 32, 128>}, {pipeline_mode = #tpu.pipeline_mode<synchronous>, transform_indices = @transform_7, window_bounds = array<i64: 8, 128>}, {pipeline_mode = #tpu.pipeline_mode<synchronous>, transform_indices = @transform_8, window_bounds = array<i64: 1, 128>}, {transform_indices = @transform_9, window_bounds = array<i64: 10, 128>}]} {
    %c0 = arith.constant 0 : index
    %c0_0 = arith.constant 0 : index
    %0 = vector.load %arg1[%c0, %c0_0] : memref<10x64xf32, #tpu.memory_space<vmem>>, vector<10x64xf32>
    %c0_1 = arith.constant 0 : index
    %c0_2 = arith.constant 0 : index
    %1 = vector.load %arg3[%c0_1, %c0_2] : memref<64x32xf32, #tpu.memory_space<vmem>>, vector<64x32xf32>
    %cst = arith.constant dense<0.000000e+00> : vector<10x32xf32>
    %2 = tpu.matmul %0, %1, %cst {dimension_numbers = #tpu.dot_dimension_numbers<[1], [0], [0], [1], [0, 0, 1, 1], [], []>} : vector<10x64xf32>, vector<64x32xf32>, vector<10x32xf32> -> vector<10x32xf32>
    %c0_3 = arith.constant 0 : index
    %c0_4 = arith.constant 0 : index
    %3 = vector.load %arg4[%c0_3, %c0_4] : memref<1x32xf32, #tpu.memory_space<vmem>>, vector<1x32xf32>
    %4 = vector.broadcast %3 : vector<1x32xf32> to vector<10x32xf32>
    %5 = arith.addf %2, %4 : vector<10x32xf32>
    %cst_5 = arith.constant 0.000000e+00 : f32
    %6 = vector.broadcast %cst_5 : f32 to vector<10x32xf32>
    %7 = arith.maximumf %5, %6 : vector<10x32xf32>
    %c0_6 = arith.constant 0 : index
    %c0_7 = arith.constant 0 : index
    %c0_8 = arith.constant 0 : index
    %8 = vector.load %arg5[%c0_6, %c0_7, %c0_8] : memref<1x32x32xf32, #tpu.memory_space<vmem>>, vector<1x32x32xf32>
    %9 = vector.shape_cast %8 : vector<1x32x32xf32> to vector<32x32xf32>
    %cst_9 = arith.constant dense<0.000000e+00> : vector<10x32xf32>
    %10 = tpu.matmul %7, %9, %cst_9 {dimension_numbers = #tpu.dot_dimension_numbers<[1], [0], [0], [1], [0, 0, 1, 1], [], []>} : vector<10x32xf32>, vector<32x32xf32>, vector<10x32xf32> -> vector<10x32xf32>
    %c0_10 = arith.constant 0 : index
    %c0_11 = arith.constant 0 : index
    %c0_12 = arith.constant 0 : index
    %11 = vector.load %arg6[%c0_10, %c0_11, %c0_12] : memref<1x1x32xf32, #tpu.memory_space<vmem>>, vector<1x1x32xf32>
    %12 = vector.shape_cast %11 : vector<1x1x32xf32> to vector<1x32xf32>
    %13 = vector.broadcast %12 : vector<1x32xf32> to vector<10x32xf32>
    %14 = arith.addf %10, %13 : vector<10x32xf32>
    %cst_13 = arith.constant 0.000000e+00 : f32
    %15 = vector.broadcast %cst_13 : f32 to vector<10x32xf32>
    %16 = arith.maximumf %14, %15 : vector<10x32xf32>
    %c0_14 = arith.constant 0 : index
    %c0_15 = arith.constant 0 : index
    %17 = vector.load %arg7[%c0_14, %c0_15] : memref<32x128xf32, #tpu.memory_space<vmem>>, vector<32x128xf32>
    %cst_16 = arith.constant dense<0.000000e+00> : vector<10x128xf32>
    %18 = tpu.matmul %16, %17, %cst_16 {dimension_numbers = #tpu.dot_dimension_numbers<[1], [0], [0], [1], [0, 0, 1, 1], [], []>} : vector<10x32xf32>, vector<32x128xf32>, vector<10x128xf32> -> vector<10x128xf32>
    %c0_17 = arith.constant 0 : index
    %c0_18 = arith.constant 0 : index
    %19 = vector.load %arg2[%c0_17, %c0_18] : memref<10x8xf32, #tpu.memory_space<vmem>>, vector<10x8xf32>
    %c0_19 = arith.constant 0 : index
    %c0_20 = arith.constant 0 : index
    %20 = vector.load %arg8[%c0_19, %c0_20] : memref<8x128xf32, #tpu.memory_space<vmem>>, vector<8x128xf32>
    %cst_21 = arith.constant dense<0.000000e+00> : vector<10x128xf32>
    %21 = tpu.matmul %19, %20, %cst_21 {dimension_numbers = #tpu.dot_dimension_numbers<[1], [0], [0], [1], [0, 0, 1, 1], [], []>} : vector<10x8xf32>, vector<8x128xf32>, vector<10x128xf32> -> vector<10x128xf32>
    %22 = arith.addf %18, %21 : vector<10x128xf32>
    %c0_22 = arith.constant 0 : index
    %c0_23 = arith.constant 0 : index
    %23 = vector.load %arg9[%c0_22, %c0_23] : memref<1x128xf32, #tpu.memory_space<vmem>>, vector<1x128xf32>
    %24 = vector.broadcast %23 : vector<1x128xf32> to vector<10x128xf32>
    %25 = arith.addf %22, %24 : vector<10x128xf32>
    %c0_24 = arith.constant 0 : index
    %c0_25 = arith.constant 0 : index
    %26 = vector.load %arg10[%c0_24, %c0_25] : memref<10x128xf32, #tpu.memory_space<vmem>>, vector<10x128xf32>
    tpu.vector_store %arg10[%c0_24, %c0_25], %25 {strides = array<i32>} : memref<10x128xf32, #tpu.memory_space<vmem>>, vector<10x128xf32>,
    return
  }
  func.func @transform_0(%arg0: i32) -> (i32, i32) {
    %c0_i32 = arith.constant 0 : i32
    %c0_i32_0 = arith.constant 0 : i32
    return %arg0, %c0_i32 : i32, i32
  }
  func.func @transform_1(%arg0: i32) -> (i32, i32) {
    %c0_i32 = arith.constant 0 : i32
    %c0_i32_0 = arith.constant 0 : i32
    return %arg0, %c0_i32 : i32, i32
  }
  func.func @transform_2(%arg0: i32) -> (i32, i32) {
    %c0_i32 = arith.constant 0 : i32
    %c0_i32_0 = arith.constant 0 : i32
    %c0_i32_1 = arith.constant 0 : i32
    return %c0_i32, %c0_i32_0 : i32, i32
  }
  func.func @transform_3(%arg0: i32) -> (i32, i32) {
    %c0_i32 = arith.constant 0 : i32
    %c0_i32_0 = arith.constant 0 : i32
    %c0_i32_1 = arith.constant 0 : i32
    return %c0_i32, %c0_i32_0 : i32, i32
  }
  func.func @transform_4(%arg0: i32) -> (i32, i32, i32) {
    %c0_i32 = arith.constant 0 : i32
    %c0_i32_0 = arith.constant 0 : i32
    %c0_i32_1 = arith.constant 0 : i32
    %c0_i32_2 = arith.constant 0 : i32
    return %c0_i32, %c0_i32_0, %c0_i32_1 : i32, i32, i32
  }
  func.func @transform_5(%arg0: i32) -> (i32, i32, i32) {
    %c0_i32 = arith.constant 0 : i32
    %c0_i32_0 = arith.constant 0 : i32
    %c0_i32_1 = arith.constant 0 : i32
    %c0_i32_2 = arith.constant 0 : i32
    return %c0_i32, %c0_i32_0, %c0_i32_1 : i32, i32, i32
  }
  func.func @transform_6(%arg0: i32) -> (i32, i32) {
    %c0_i32 = arith.constant 0 : i32
    %c0_i32_0 = arith.constant 0 : i32
    %c0_i32_1 = arith.constant 0 : i32
    return %c0_i32, %c0_i32_0 : i32, i32
  }
  func.func @transform_7(%arg0: i32) -> (i32, i32) {
    %c0_i32 = arith.constant 0 : i32
    %c0_i32_0 = arith.constant 0 : i32
    %c0_i32_1 = arith.constant 0 : i32
    return %c0_i32, %c0_i32_0 : i32, i32
  }
  func.func @transform_8(%arg0: i32) -> (i32, i32) {
    %c0_i32 = arith.constant 0 : i32
    %c0_i32_0 = arith.constant 0 : i32
    %c0_i32_1 = arith.constant 0 : i32
    return %c0_i32, %c0_i32_0 : i32, i32
  }
  func.func @transform_9(%arg0: i32) -> (i32, i32) {
    %c0_i32 = arith.constant 0 : i32
    %c0_i32_0 = arith.constant 0 : i32
    return %arg0, %c0_i32 : i32, i32
  }
}

</mosaic_0001>

<llo_original>
// kernel: cond_embed_encoder_fc.1
$region0: #{cond_embed_encoder_fc.1}
  #allocation0 [shape = 'u32[]', space=smem, size = 0x4, offset = 0x4, fixed_abs, tag = 'smem constant byte address 0x4 - core index']
  #allocation1 [shape = 'u32[144,128]{1,0:T(1,128)}', space=vmem, size = 0x12000, scoped, tag = 'internal scratch']
  %s0 = inlined_call_operand.vmem [shape: f32[10,64], index: 0, kind: input, shape index: {}]
  %s1 = inlined_call_operand.vmem [shape: f32[10,8], index: 1, kind: input, shape index: {}]
  %s2 = inlined_call_operand.vmem [shape: f32[64,32], index: 2, kind: input, shape index: {}]
  %s3 = inlined_call_operand.vmem [shape: f32[1,32], index: 3, kind: input, shape index: {}]
  %s4 = inlined_call_operand.vmem [shape: f32[1,32,32], index: 4, kind: input, shape index: {}]
  %s5 = inlined_call_operand.vmem [shape: f32[1,1,32], index: 5, kind: input, shape index: {}]
  %s6 = inlined_call_operand.vmem [shape: f32[32,128], index: 6, kind: input, shape index: {}]
  %s7 = inlined_call_operand.vmem [shape: f32[8,128], index: 7, kind: input, shape index: {}]
  %s8 = inlined_call_operand.vmem [shape: f32[1,128], index: 8, kind: input, shape index: {}]
  %s9 = inlined_call_operand.vmem [shape: f32[10,128], index: 9, kind: output, shape index: {}]
  %s10 = sld [smem:[#allocation0]]
  $region46: #{cond_embed_encoder_fc.1} parent=0
    _
  %s12 = ssub.s32 1, %s10
  %s13 = scalar_select 0, %s12, %s10
  // Predicated region
  $region2: #{cond_embed_encoder_fc.1} parent=0 // pred_check
    _
  $region3: #{cond_embed_encoder_fc.1} parent=0 // pred_check_branch
    %15 = sbr.rel (0) target = $region5
  $region4: #{cond_embed_encoder_fc.1} parent=0 // pred_region
    _
  $region5: #{cond_embed_encoder_fc.1} parent=0 // pred_fallthru
    _
  // Predicated region
  $region6: #{cond_embed_encoder_fc.1} parent=0 // pred_check
    _
  $region7: #{cond_embed_encoder_fc.1} parent=0 // pred_check_branch
    %17 = sbr.rel (0) target = $region9
  $region8: #{cond_embed_encoder_fc.1} parent=0 // pred_region
    _
  $region9: #{cond_embed_encoder_fc.1} parent=0 // pred_fallthru
    _
  // Predicated region
  $region10: #{cond_embed_encoder_fc.1} parent=0 // pred_check
    _
  $region11: #{cond_embed_encoder_fc.1} parent=0 // pred_check_branch
    %19 = sbr.rel (0) target = $region13
  $region12: #{cond_embed_encoder_fc.1} parent=0 // pred_region
    _
  $region13: #{cond_embed_encoder_fc.1} parent=0 // pred_fallthru
    _
  // Predicated region
  $region14: #{cond_embed_encoder_fc.1} parent=0 // pred_check
    _
  $region15: #{cond_embed_encoder_fc.1} parent=0 // pred_check_branch
    %21 = sbr.rel (0) target = $region17
  $region16: #{cond_embed_encoder_fc.1} parent=0 // pred_region
    _
  $region17: #{cond_embed_encoder_fc.1} parent=0 // pred_fallthru
    _
  // Predicated region
  $region18: #{cond_embed_encoder_fc.1} parent=0 // pred_check
    _
  $region19: #{cond_embed_encoder_fc.1} parent=0 // pred_check_branch
    %23 = sbr.rel (0) target = $region21
  $region20: #{cond_embed_encoder_fc.1} parent=0 // pred_region
    _
  $region21: #{cond_embed_encoder_fc.1} parent=0 // pred_fallthru
    _
  // Predicated region
  $region22: #{cond_embed_encoder_fc.1} parent=0 // pred_check
    _
  $region23: #{cond_embed_encoder_fc.1} parent=0 // pred_check_branch
    %25 = sbr.rel (0) target = $region25
  $region24: #{cond_embed_encoder_fc.1} parent=0 // pred_region
    _
  $region25: #{cond_embed_encoder_fc.1} parent=0 // pred_fallthru
    _
  // Predicated region
  $region26: #{cond_embed_encoder_fc.1} parent=0 // pred_check
    _
  $region27: #{cond_embed_encoder_fc.1} parent=0 // pred_check_branch
    %27 = sbr.rel (0) target = $region29
  $region28: #{cond_embed_encoder_fc.1} parent=0 // pred_region
    _
  $region29: #{cond_embed_encoder_fc.1} parent=0 // pred_fallthru
    _
  // Predicated region
  $region30: #{cond_embed_encoder_fc.1} parent=0 // pred_check
    _
  $region31: #{cond_embed_encoder_fc.1} parent=0 // pred_check_branch
    %29 = sbr.rel (0) target = $region33
  $region32: #{cond_embed_encoder_fc.1} parent=0 // pred_region
    _
  $region33: #{cond_embed_encoder_fc.1} parent=0 // pred_fallthru
    _
  // Predicated region
  $region34: #{cond_embed_encoder_fc.1} parent=0 // pred_check
    _
  $region35: #{cond_embed_encoder_fc.1} parent=0 // pred_check_branch
    %31 = sbr.rel (0) target = $region37
  $region36: #{cond_embed_encoder_fc.1} parent=0 // pred_region
    _
  $region37: #{cond_embed_encoder_fc.1} parent=0 // pred_fallthru
    _
  %v32 = vld [vmem:[%s0] sm:$0xff]
  %v33 = vld [vmem:[%s0 + $0x8] sm:$0x3]
  %v34 = vld [vmem:[%s2] sm:$0xff]
  %v35 = vld [vmem:[%s2 + $0x8] sm:$0xff]
  %v36 = vld [vmem:[%s2 + $0x10] sm:$0xff]
  %v37 = vld [vmem:[%s2 + $0x18] sm:$0xff]
  %v38 = vld [vmem:[%s2 + $0x20] sm:$0xff]
  %v39 = vld [vmem:[%s2 + $0x28] sm:$0xff]
  %v40 = vld [vmem:[%s2 + $0x30] sm:$0xff]
  %v41 = vld [vmem:[%s2 + $0x38] sm:$0xff]
  %v42 = vld [vmem:[%s3] sm:$0x1]
  %v44 = vlaneseq
  %v45 = vshrl.u32 %v44, 7
  %v46 = vsub.s32 0, %v45
  %v47 = vrot.slane %v42, %v46
  %vm49 = vcmask 523264
  %v51 = vsel %vm49, %v32, 0
  %v54 = vsel %vm49, %v33, 0
  %56 = vmatprep.subr.mxu0 0.0
  %57 = vmatpush1.msra.mxu0 0.0
  %58 = vmatprep.subr.mxu0 0.0
  %59 = vmatpush1.msra.mxu0 0.0
  %60 = vmatprep.subr.mxu0 0.0
  %61 = vmatpush1.msra.mxu0 0.0
  %62 = vmatprep.subr.mxu0 0.0
  %63 = vmatpush1.msra.mxu0 0.0
  %64 = vmatprep.subr.mxu0 0.0
  %65 = vmatpush1.msra.mxu0 0.0
  %66 = vmatprep.subr.mxu0 0.0
  %67 = vmatpush1.msra.mxu0 0.0
  %68 = vmatprep.subr.mxu0 0.0
  %69 = vmatpush1.msra.mxu0 0.0
  %70 = vmatprep.subr.mxu0 0.0
  %71 = vmatpush1.msra.mxu0 0.0
  %72 = vmatprep.subr.mxu0 0.0
  %73 = vmatpush1.msra.mxu0 %v41
  %74 = vmatprep.subr.mxu0 0.0
  %75 = vmatpush1.msra.mxu0 %v40
  %76 = vmatprep.subr.mxu0 0.0
  %77 = vmatpush1.msra.mxu0 %v39
  %78 = vmatprep.subr.mxu0 0.0
  %79 = vmatpush1.msra.mxu0 %v38
  %80 = vmatprep.subr.mxu0 0.0
  %81 = vmatpush1.msra.mxu0 %v37
  %82 = vmatprep.subr.mxu0 0.0
  %83 = vmatpush1.msra.mxu0 %v36
  %84 = vmatprep.subr.mxu0 0.0
  %85 = vmatpush1.msra.mxu0 %v35
  %86 = vmatprep.subr.mxu0 0.0
  %87 = vmatpush1.msra.mxu0 %v34
  %88 = vmatprep.subr.mxu0 0.0
  %89 = vmatpush2.msra.mxu0 0.0
  %90 = vmatprep.subr.mxu0 0.0
  %91 = vmatpush2.msra.mxu0 0.0
  %92 = vmatprep.subr.mxu0 0.0
  %93 = vmatpush2.msra.mxu0 0.0
  %94 = vmatprep.subr.mxu0 0.0
  %95 = vmatpush2.msra.mxu0 0.0
  %96 = vmatprep.subr.mxu0 0.0
  %97 = vmatpush2.msra.mxu0 0.0
  %98 = vmatprep.subr.mxu0 0.0
  %99 = vmatpush2.msra.mxu0 0.0
  %100 = vmatprep.subr.mxu0 0.0
  %101 = vmatpush2.msra.mxu0 0.0
  %102 = vmatprep.subr.mxu0 0.0
  %103 = vmatpush2.msra.mxu0 0.0
  %104 = vmatprep.subr.mxu0 0.0
  %105 = vmatpush2.msra.mxu0 0.0
  %106 = vmatprep.subr.mxu0 0.0
  %107 = vmatpush2.msra.mxu0 0.0
  %108 = vmatprep.subr.mxu0 0.0
  %109 = vmatpush2.msra.mxu0 0.0
  %110 = vmatprep.subr.mxu0 0.0
  %111 = vmatpush2.msra.mxu0 0.0
  %112 = vmatprep.subr.mxu0 0.0
  %113 = vmatpush2.msra.mxu0 0.0
  %114 = vmatprep.subr.mxu0 0.0
  %115 = vmatpush2.msra.mxu0 0.0
  %116 = vmatprep.subr.mxu0 0.0
  %117 = vmatpush2.msra.mxu0 0.0
  %118 = vmatprep.subr.mxu0 0.0
  %119 = vmatpush2.msra.mxu0 0.0
  %120 = vmatprep.mubr.f32.mxu0 0.0
  %121 = vmatmul.mubr.f32.gmra.mxu0 %v51
  %v122 = vpop.f32.mrf.mxu0
  %v123 = vadd.f32 %v47, %v122
  %v124 = vpop.f32.mrf.mxu0
  %125 = vmatprep.mubr.f32.mxu0 0.0
  %126 = vmatmul.mubr.f32.gmra.mxu0 %v54
  %v127 = vpop.f32.mrf.mxu0
  %v128 = vadd.f32 %v47, %v127
  %v129 = vpop.f32.mrf.mxu0
  %130 = vdwg.mxu0
  %v131 = vmax.f32 %v123, 0.0
  %v132 = vmax.f32 %v128, 0.0
  %v133 = vld [vmem:[%s4] sm:$0xff]
  %v134 = vld [vmem:[%s4 + $0x8] sm:$0xff]
  %v135 = vld [vmem:[%s4 + $0x10] sm:$0xff]
  %v136 = vld [vmem:[%s4 + $0x18] sm:$0xff]
  %v137 = vld [vmem:[%s5] sm:$0x1]
  %v139 = vlaneseq
  %v140 = vshrl.u32 %v139, 7
  %v141 = vsub.s32 0, %v140
  %v142 = vrot.slane %v137, %v141
  %vm144 = vcmask 261120
  %v146 = vsel %vm144, %v131, 0
  %v149 = vsel %vm144, %v132, 0
  %151 = vmatprep.subr.mxu0 0.0
  %152 = vmatpush1.msra.mxu0 0.0
  %153 = vmatprep.subr.mxu0 0.0
  %154 = vmatpush1.msra.mxu0 0.0
  %155 = vmatprep.subr.mxu0 0.0
  %156 = vmatpush1.msra.mxu0 0.0
  %157 = vmatprep.subr.mxu0 0.0
  %158 = vmatpush1.msra.mxu0 0.0
  %159 = vmatprep.subr.mxu0 0.0
  %160 = vmatpush1.msra.mxu0 0.0
  %161 = vmatprep.subr.mxu0 0.0
  %162 = vmatpush1.msra.mxu0 0.0
  %163 = vmatprep.subr.mxu0 0.0
  %164 = vmatpush1.msra.mxu0 0.0
  %165 = vmatprep.subr.mxu0 0.0
  %166 = vmatpush1.msra.mxu0 0.0
  %167 = vmatprep.subr.mxu0 0.0
  %168 = vmatpush1.msra.mxu0 0.0
  %169 = vmatprep.subr.mxu0 0.0
  %170 = vmatpush1.msra.mxu0 0.0
  %171 = vmatprep.subr.mxu0 0.0
  %172 = vmatpush1.msra.mxu0 0.0
  %173 = vmatprep.subr.mxu0 0.0
  %174 = vmatpush1.msra.mxu0 0.0
  %175 = vmatprep.subr.mxu0 0.0
  %176 = vmatpush1.msra.mxu0 %v136
  %177 = vmatprep.subr.mxu0 0.0
  %178 = vmatpush1.msra.mxu0 %v135
  %179 = vmatprep.subr.mxu0 0.0
  %180 = vmatpush1.msra.mxu0 %v134
  %181 = vmatprep.subr.mxu0 0.0
  %182 = vmatpush1.msra.mxu0 %v133
  %183 = vmatprep.subr.mxu0 0.0
  %184 = vmatpush2.msra.mxu0 0.0
  %185 = vmatprep.subr.mxu0 0.0
  %186 = vmatpush2.msra.mxu0 0.0
  %187 = vmatprep.subr.mxu0 0.0
  %188 = vmatpush2.msra.mxu0 0.0
  %189 = vmatprep.subr.mxu0 0.0
  %190 = vmatpush2.msra.mxu0 0.0
  %191 = vmatprep.subr.mxu0 0.0
  %192 = vmatpush2.msra.mxu0 0.0
  %193 = vmatprep.subr.mxu0 0.0
  %194 = vmatpush2.msra.mxu0 0.0
  %195 = vmatprep.subr.mxu0 0.0
  %196 = vmatpush2.msra.mxu0 0.0
  %197 = vmatprep.subr.mxu0 0.0
  %198 = vmatpush2.msra.mxu0 0.0
  %199 = vmatprep.subr.mxu0 0.0
  %200 = vmatpush2.msra.mxu0 0.0
  %201 = vmatprep.subr.mxu0 0.0
  %202 = vmatpush2.msra.mxu0 0.0
  %203 = vmatprep.subr.mxu0 0.0
  %204 = vmatpush2.msra.mxu0 0.0
  %205 = vmatprep.subr.mxu0 0.0
  %206 = vmatpush2.msra.mxu0 0.0
  %207 = vmatprep.subr.mxu0 0.0
  %208 = vmatpush2.msra.mxu0 0.0
  %209 = vmatprep.subr.mxu0 0.0
  %210 = vmatpush2.msra.mxu0 0.0
  %211 = vmatprep.subr.mxu0 0.0
  %212 = vmatpush2.msra.mxu0 0.0
  %213 = vmatprep.subr.mxu0 0.0
  %214 = vmatpush2.msra.mxu0 0.0
  %215 = vmatprep.mubr.f32.mxu0 0.0
  %216 = vmatmul.mubr.f32.gmra.mxu0 %v146
  %v217 = vpop.f32.mrf.mxu0
  %v218 = vadd.f32 %v142, %v217
  %v219 = vpop.f32.mrf.mxu0
  %220 = vmatprep.mubr.f32.mxu0 0.0
  %221 = vmatmul.mubr.f32.gmra.mxu0 %v149
  %v222 = vpop.f32.mrf.mxu0
  %v223 = vadd.f32 %v142, %v222
  %v224 = vpop.f32.mrf.mxu0
  %225 = vdwg.mxu0
  %v226 = vmax.f32 %v218, 0.0
  %v227 = vmax.f32 %v223, 0.0
  %v228 = vld [vmem:[%s6] sm:$0xff]
  %v229 = vld [vmem:[%s6 + $0x8] sm:$0xff]
  %v230 = vld [vmem:[%s6 + $0x10] sm:$0xff]
  %v231 = vld [vmem:[%s6 + $0x18] sm:$0xff]
  %v232 = vld [vmem:[%s1] sm:$0xff]
  %v233 = vld [vmem:[%s1 + $0x8] sm:$0x3]
  %v234 = vld [vmem:[%s7] sm:$0xff]
  %vm235 = vcmask 64512
  %v237 = vsel %vm235, %v232, 0
  %v240 = vsel %vm235, %v233, 0
  %242 = vmatprep.subr.mxu0 0.0
  %243 = vmatpush1.msra.mxu0 0.0
  %244 = vmatprep.subr.mxu0 0.0
  %245 = vmatpush1.msra.mxu0 0.0
  %246 = vmatprep.subr.mxu0 0.0
  %247 = vmatpush1.msra.mxu0 0.0
  %248 = vmatprep.subr.mxu0 0.0
  %249 = vmatpush1.msra.mxu0 0.0
  %250 = vmatprep.subr.mxu0 0.0
  %251 = vmatpush1.msra.mxu0 0.0
  %252 = vmatprep.subr.mxu0 0.0
  %253 = vmatpush1.msra.mxu0 0.0
  %254 = vmatprep.subr.mxu0 0.0
  %255 = vmatpush1.msra.mxu0 0.0
  %256 = vmatprep.subr.mxu0 0.0
  %257 = vmatpush1.msra.mxu0 0.0
  %258 = vmatprep.subr.mxu0 0.0
  %259 = vmatpush1.msra.mxu0 0.0
  %260 = vmatprep.subr.mxu0 0.0
  %261 = vmatpush1.msra.mxu0 0.0
  %262 = vmatprep.subr.mxu0 0.0
  %263 = vmatpush1.msra.mxu0 0.0
  %264 = vmatprep.subr.mxu0 0.0
  %265 = vmatpush1.msra.mxu0 0.0
  %266 = vmatprep.subr.mxu0 0.0
  %267 = vmatpush1.msra.mxu0 0.0
  %268 = vmatprep.subr.mxu0 0.0
  %269 = vmatpush1.msra.mxu0 0.0
  %270 = vmatprep.subr.mxu0 0.0
  %271 = vmatpush1.msra.mxu0 0.0
  %272 = vmatprep.subr.mxu0 0.0
  %273 = vmatpush1.msra.mxu0 %v234
  %274 = vmatprep.subr.mxu0 0.0
  %275 = vmatpush2.msra.mxu0 0.0
  %276 = vmatprep.subr.mxu0 0.0
  %277 = vmatpush2.msra.mxu0 0.0
  %278 = vmatprep.subr.mxu0 0.0
  %279 = vmatpush2.msra.mxu0 0.0
  %280 = vmatprep.subr.mxu0 0.0
  %281 = vmatpush2.msra.mxu0 0.0
  %282 = vmatprep.subr.mxu0 0.0
  %283 = vmatpush2.msra.mxu0 0.0
  %284 = vmatprep.subr.mxu0 0.0
  %285 = vmatpush2.msra.mxu0 0.0
  %286 = vmatprep.subr.mxu0 0.0
  %287 = vmatpush2.msra.mxu0 0.0
  %288 = vmatprep.subr.mxu0 0.0
  %289 = vmatpush2.msra.mxu0 0.0
  %290 = vmatprep.subr.mxu0 0.0
  %291 = vmatpush2.msra.mxu0 0.0
  %292 = vmatprep.subr.mxu0 0.0
  %293 = vmatpush2.msra.mxu0 0.0
  %294 = vmatprep.subr.mxu0 0.0
  %295 = vmatpush2.msra.mxu0 0.0
  %296 = vmatprep.subr.mxu0 0.0
  %297 = vmatpush2.msra.mxu0 0.0
  %298 = vmatprep.subr.mxu0 0.0
  %299 = vmatpush2.msra.mxu0 0.0
  %300 = vmatprep.subr.mxu0 0.0
  %301 = vmatpush2.msra.mxu0 0.0
  %302 = vmatprep.subr.mxu0 0.0
  %303 = vmatpush2.msra.mxu0 0.0
  %304 = vmatprep.subr.mxu0 0.0
  %305 = vmatpush2.msra.mxu0 0.0
  %306 = vmatprep.mubr.f32.mxu0 0.0
  %307 = vmatmul.mubr.f32.gmra.mxu0 %v237
  %v308 = vpop.f32.mrf.mxu0
  %v309 = vadd.f32 0.0, %v308
  %v310 = vpop.f32.mrf.mxu0
  %311 = vmatprep.mubr.f32.mxu0 0.0
  %312 = vmatmul.mubr.f32.gmra.mxu0 %v240
  %v313 = vpop.f32.mrf.mxu0
  %v314 = vadd.f32 0.0, %v313
  %v315 = vpop.f32.mrf.mxu0
  %316 = vdwg.mxu0
  %v318 = vsel %vm144, %v226, 0
  %v321 = vsel %vm144, %v227, 0
  %323 = vmatprep.subr.mxu0 0.0
  %324 = vmatpush1.msra.mxu0 0.0
  %325 = vmatprep.subr.mxu0 0.0
  %326 = vmatpush1.msra.mxu0 0.0
  %327 = vmatprep.subr.mxu0 0.0
  %328 = vmatpush1.msra.mxu0 0.0
  %329 = vmatprep.subr.mxu0 0.0
  %330 = vmatpush1.msra.mxu0 0.0
  %331 = vmatprep.subr.mxu0 0.0
  %332 = vmatpush1.msra.mxu0 0.0
  %333 = vmatprep.subr.mxu0 0.0
  %334 = vmatpush1.msra.mxu0 0.0
  %335 = vmatprep.subr.mxu0 0.0
  %336 = vmatpush1.msra.mxu0 0.0
  %337 = vmatprep.subr.mxu0 0.0
  %338 = vmatpush1.msra.mxu0 0.0
  %339 = vmatprep.subr.mxu0 0.0
  %340 = vmatpush1.msra.mxu0 0.0
  %341 = vmatprep.subr.mxu0 0.0
  %342 = vmatpush1.msra.mxu0 0.0
  %343 = vmatprep.subr.mxu0 0.0
  %344 = vmatpush1.msra.mxu0 0.0
  %345 = vmatprep.subr.mxu0 0.0
  %346 = vmatpush1.msra.mxu0 0.0
  %347 = vmatprep.subr.mxu0 0.0
  %348 = vmatpush1.msra.mxu0 %v231
  %349 = vmatprep.subr.mxu0 0.0
  %350 = vmatpush1.msra.mxu0 %v230
  %351 = vmatprep.subr.mxu0 0.0
  %352 = vmatpush1.msra.mxu0 %v229
  %353 = vmatprep.subr.mxu0 0.0
  %354 = vmatpush1.msra.mxu0 %v228
  %355 = vmatprep.subr.mxu0 0.0
  %356 = vmatpush2.msra.mxu0 0.0
  %357 = vmatprep.subr.mxu0 0.0
  %358 = vmatpush2.msra.mxu0 0.0
  %359 = vmatprep.subr.mxu0 0.0
  %360 = vmatpush2.msra.mxu0 0.0
  %361 = vmatprep.subr.mxu0 0.0
  %362 = vmatpush2.msra.mxu0 0.0
  %363 = vmatprep.subr.mxu0 0.0
  %364 = vmatpush2.msra.mxu0 0.0
  %365 = vmatprep.subr.mxu0 0.0
  %366 = vmatpush2.msra.mxu0 0.0
  %367 = vmatprep.subr.mxu0 0.0
  %368 = vmatpush2.msra.mxu0 0.0
  %369 = vmatprep.subr.mxu0 0.0
  %370 = vmatpush2.msra.mxu0 0.0
  %371 = vmatprep.subr.mxu0 0.0
  %372 = vmatpush2.msra.mxu0 0.0
  %373 = vmatprep.subr.mxu0 0.0
  %374 = vmatpush2.msra.mxu0 0.0
  %375 = vmatprep.subr.mxu0 0.0
  %376 = vmatpush2.msra.mxu0 0.0
  %377 = vmatprep.subr.mxu0 0.0
  %378 = vmatpush2.msra.mxu0 0.0
  %379 = vmatprep.subr.mxu0 0.0
  %380 = vmatpush2.msra.mxu0 0.0
  %381 = vmatprep.subr.mxu0 0.0
  %382 = vmatpush2.msra.mxu0 0.0
  %383 = vmatprep.subr.mxu0 0.0
  %384 = vmatpush2.msra.mxu0 0.0
  %385 = vmatprep.subr.mxu0 0.0
  %386 = vmatpush2.msra.mxu0 0.0
  %387 = vmatprep.mubr.f32.mxu0 0.0
  %388 = vmatmul.mubr.f32.gmra.mxu0 %v318
  %v389 = vpop.f32.mrf.mxu0
  %v390 = vadd.f32 %v309, %v389
  %v391 = vpop.f32.mrf.mxu0
  %392 = vmatprep.mubr.f32.mxu0 0.0
  %393 = vmatmul.mubr.f32.gmra.mxu0 %v321
  %v394 = vpop.f32.mrf.mxu0
  %v395 = vadd.f32 %v314, %v394
  %v396 = vpop.f32.mrf.mxu0
  %397 = vdwg.mxu0
  %v398 = vld [vmem:[%s8] sm:$0x1]
  %v400 = vlaneseq
  %v401 = vshrl.u32 %v400, 7
  %v402 = vsub.s32 0, %v401
  %v403 = vrot.slane %v398, %v402
  %v405 = vadd.f32 %v390, %v403
  %v406 = vadd.f32 %v395, %v403
  %407 = vst [vmem:[%s9] sm:$0xff] %v405
  %408 = vst [vmem:[%s9 + $0x8] sm:$0x3] %v406
  // Predicated region
  $region38: #{cond_embed_encoder_fc.1} parent=0 // pred_check
    _
  $region39: #{cond_embed_encoder_fc.1} parent=0 // pred_check_branch
    %410 = sbr.rel (0) target = $region41
  $region40: #{cond_embed_encoder_fc.1} parent=0 // pred_region
    _
  $region41: #{cond_embed_encoder_fc.1} parent=0 // pred_fallthru
    _
  // Predicated region
  $region42: #{cond_embed_encoder_fc.1} parent=0 // pred_check
    _
  $region43: #{cond_embed_encoder_fc.1} parent=0 // pred_check_branch
    %412 = sbr.rel (0) target = $region45
  $region44: #{cond_embed_encoder_fc.1} parent=0 // pred_region
    _
  $region45: #{cond_embed_encoder_fc.1} parent=0 // pred_fallthru
    _

</llo_original>
